<compile_context>
chip_gen: v7x
topology: tpu7x:2x2x1
jax: 0.10.0
libtpu: 0.0.40
codegen_flags: <defaults>
</compile_context>

<pallas_src>
import functools

import jax
import jax.numpy as jnp
from jax.experimental import pallas as pl
from jax.experimental.pallas import tpu as pltpu


def _policy_kernel(t_ref, obs_ref, w1o_ref, w1t_ref, b1_ref, w2_ref, b2_ref,
                   w3_ref, b3_ref, hi_ref, lo_ref, o_ref, *, compute_dtype):
    """One batch tile: fused (concat -> Linear/ReLU x2 -> Linear -> tanh rescale)."""
    cd = compute_dtype
    t = t_ref[0, 0]                       # virtual_t scalar (SMEM)
    obs = obs_ref[...]

    # Layer 1 -- torch.cat((obs, t*ones), 1) @ W1 folded into:
    #   obs @ W1[:obs_dim] + t * W1[obs_dim] + b1
    h = jnp.dot(obs.astype(cd), w1o_ref[...], preferred_element_type=jnp.float32)
    h = h + (t * w1t_ref[...] + b1_ref[...])
    h = jnp.maximum(h, 0.0)               # hidden activation: ReLU

    # Layer 2
    h = jnp.dot(h.astype(cd), w2_ref[...], preferred_element_type=jnp.float32)
    h = jnp.maximum(h + b2_ref[...], 0.0)

    # Output layer (Identity) + tanh squashing into the action box
    u = jnp.dot(h.astype(cd), w3_ref[...], preferred_element_type=jnp.float32)
    u = u + b3_ref[...]
    hi = hi_ref[...]
    lo = lo_ref[...]
    o_ref[...] = 0.5 * (hi - lo) * jnp.tanh(u) + 0.5 * (hi + lo)


@functools.partial(jax.jit, static_argnames=("block_b", "compute_dtype"))
def finite_horizon_policy_forward(obs, params, act_high_lim, act_low_lim,
                                  virtual_t=1.0, *, block_b=1024,
                                  compute_dtype=jnp.float32):
    """obs:(B,obs_dim) -> action:(B,act_dim). Matches FiniteHorizonPolicy.forward."""
    (w1, b1), (w2, b2), (w3, b3) = params
    obs = jnp.asarray(obs, jnp.float32)
    B, obs_dim = obs.shape
    act_dim = w3.shape[1]

    # Split W1 once: obs rows feed the MXU, the time-step row becomes a broadcast add.
    w1_obs = w1[:obs_dim, :].astype(compute_dtype)
    w1_t = w1[obs_dim:, :].astype(jnp.float32)                 # (1, H1)
    w2c = w2.astype(compute_dtype)
    w3c = w3.astype(compute_dtype)

    t_arr = jnp.full((1, 1), virtual_t, jnp.float32)
    hi = jnp.asarray(act_high_lim, jnp.float32).reshape(1, act_dim)
    lo = jnp.asarray(act_low_lim, jnp.float32).reshape(1, act_dim)

    # Batch tile: one full-B block for small batches, otherwise block_b rows
    # (multiple of 8; sized to stay well inside v7x's smaller VMEM budget).
    tb = B if B <= block_b else block_b
    grid = (pl.cdiv(B, tb),)

    def tiled(feat):                       # batch-tiled operand
        return pl.BlockSpec((tb, feat), lambda i: (i, 0))

    def resident(arr):                     # VMEM-resident across all batch tiles
        return pl.BlockSpec(arr.shape, lambda i: (0, 0))

    grid_spec = pltpu.PrefetchScalarGridSpec(
        num_scalar_prefetch=0,
        grid=grid,
        in_specs=[
            pl.BlockSpec(memory_space=pltpu.SMEM),     # virtual_t scalar
            tiled(obs_dim),                            # obs
            resident(w1_obs), resident(w1_t), resident(b1),
            resident(w2c), resident(b2),
            resident(w3c), resident(b3),
            resident(hi), resident(lo),
        ],
        out_specs=tiled(act_dim),
    )

    kernel = functools.partial(_policy_kernel, compute_dtype=compute_dtype)
    return pl.pallas_call(
        kernel,
        out_shape=jax.ShapeDtypeStruct((B, act_dim), jnp.float32),
        grid_spec=grid_spec,
        compiler_params=pltpu.CompilerParams(
            dimension_semantics=("parallel",),         # shard batch tiles across TCs (v7x)
            vmem_limit_bytes=32 * 1024 * 1024,
        ),
    )(t_arr, obs, w1_obs, w1_t, b1, w2c, b2, w3c, b3, hi, lo)


def init_params(key, obs_dim, act_dim, hidden_sizes):
    """Mimic torch.nn.Linear default init (U[-1/sqrt(fan_in), +1/sqrt(fan_in)])."""
    sizes = [obs_dim + 1] + list(hidden_sizes) + [act_dim]   # +1: virtual time step
    params = []
    for j in range(len(sizes) - 1):
        key, kw, kb = jax.random.split(key, 3)
        bound = 1.0 / (sizes[j] ** 0.5)
        w = jax.random.uniform(kw, (sizes[j], sizes[j + 1]), jnp.float32, -bound, bound)
        b = jax.random.uniform(kb, (1, sizes[j + 1]), jnp.float32, -bound, bound)
        params.append((w, b))
    return params


if __name__ == "__main__":
    key = jax.random.PRNGKey(0)
    B, obs_dim, act_dim = 16, 12, 4
    hidden_sizes = (32, 32)
    virtual_t = 3.0

    k_obs, k_par = jax.random.split(key)
    obs = jax.random.normal(k_obs, (B, obs_dim), jnp.float32)
    params = init_params(k_par, obs_dim, act_dim, hidden_sizes)
    act_high = jnp.array([1.0, 2.0, 0.5, 1.5], jnp.float32)
    act_low = jnp.array([-1.0, -2.0, -0.5, -0.5], jnp.float32)

    # block_b=8 so the small demo still exercises the batch grid (2 tiles).
    action = finite_horizon_policy_forward(obs, params, act_high, act_low,
                                           virtual_t, block_b=8)
    jax.block_until_ready(action)

    # Pure-JAX reference of the exact PyTorch math.
    (w1, b1), (w2, b2), (w3, b3) = params
    x = jnp.concatenate([obs, jnp.full((B, 1), virtual_t, jnp.float32)], axis=1)
    h = jnp.maximum(x @ w1 + b1, 0.0)
    h = jnp.maximum(h @ w2 + b2, 0.0)
    u = h @ w3 + b3
    ref = (act_high - act_low) / 2.0 * jnp.tanh(u) + (act_high + act_low) / 2.0

    assert action.shape == (B, act_dim)
    assert jnp.allclose(action, ref, atol=1e-4, rtol=1e-4), float(
        jnp.max(jnp.abs(action - ref)))

    print("KERNEL_OK")
</pallas_src>

<mosaic_0001>
module attributes {stable_mosaic.version = 11 : i64} {
  func.func @_policy_kernel(%arg0: i32, %arg1: memref<1x1xf32, #tpu.memory_space<smem>>, %arg2: memref<8x12xf32, #tpu.memory_space<vmem>>, %arg3: memref<12x32xf32, #tpu.memory_space<vmem>>, %arg4: memref<1x32xf32, #tpu.memory_space<vmem>>, %arg5: memref<1x32xf32, #tpu.memory_space<vmem>>, %arg6: memref<32x32xf32, #tpu.memory_space<vmem>>, %arg7: memref<1x32xf32, #tpu.memory_space<vmem>>, %arg8: memref<32x4xf32, #tpu.memory_space<vmem>>, %arg9: memref<1x4xf32, #tpu.memory_space<vmem>>, %arg10: memref<1x4xf32, #tpu.memory_space<vmem>>, %arg11: memref<1x4xf32, #tpu.memory_space<vmem>>, %arg12: memref<8x4xf32, #tpu.memory_space<vmem>>) attributes {dimension_semantics = [#tpu.dimension_semantics<parallel>], iteration_bounds = array<i64: 2>, scalar_prefetch = 0 : i64, scratch_operands = 0 : i64, tpu.core_type = #tpu.core_type<tc>, window_params = [{transform_indices = @transform_0, window_bounds = array<i64: 1, 1>}, {transform_indices = @transform_1, window_bounds = array<i64: 8, 12>}, {pipeline_mode = #tpu.pipeline_mode<synchronous>, transform_indices = @transform_2, window_bounds = array<i64: 12, 32>}, {pipeline_mode = #tpu.pipeline_mode<synchronous>, transform_indices = @transform_3, window_bounds = array<i64: 1, 32>}, {pipeline_mode = #tpu.pipeline_mode<synchronous>, transform_indices = @transform_4, window_bounds = array<i64: 1, 32>}, {pipeline_mode = #tpu.pipeline_mode<synchronous>, transform_indices = @transform_5, window_bounds = array<i64: 32, 32>}, {pipeline_mode = #tpu.pipeline_mode<synchronous>, transform_indices = @transform_6, window_bounds = array<i64: 1, 32>}, {pipeline_mode = #tpu.pipeline_mode<synchronous>, transform_indices = @transform_7, window_bounds = array<i64: 32, 4>}, {pipeline_mode = #tpu.pipeline_mode<synchronous>, transform_indices = @transform_8, window_bounds = array<i64: 1, 4>}, {pipeline_mode = #tpu.pipeline_mode<synchronous>, transform_indices = @transform_9, window_bounds = array<i64: 1, 4>}, {pipeline_mode = #tpu.pipeline_mode<synchronous>, transform_indices = @transform_10, window_bounds = array<i64: 1, 4>}, {transform_indices = @transform_11, window_bounds = array<i64: 8, 4>}]} {
    %c0 = arith.constant 0 : index
    %c0_0 = arith.constant 0 : index
    %0 = memref.load %arg1[%c0, %c0_0] : memref<1x1xf32, #tpu.memory_space<smem>>
    %c0_1 = arith.constant 0 : index
    %c0_2 = arith.constant 0 : index
    %1 = vector.load %arg2[%c0_1, %c0_2] : memref<8x12xf32, #tpu.memory_space<vmem>>, vector<8x12xf32>
    %c0_3 = arith.constant 0 : index
    %c0_4 = arith.constant 0 : index
    %2 = vector.load %arg3[%c0_3, %c0_4] : memref<12x32xf32, #tpu.memory_space<vmem>>, vector<12x32xf32>
    %cst = arith.constant dense<0.000000e+00> : vector<8x32xf32>
    %3 = tpu.matmul %1, %2, %cst {dimension_numbers = #tpu.dot_dimension_numbers<[1], [0], [0], [1], [0, 0, 1, 1], [], []>} : vector<8x12xf32>, vector<12x32xf32>, vector<8x32xf32> -> vector<8x32xf32>
    %c0_5 = arith.constant 0 : index
    %c0_6 = arith.constant 0 : index
    %4 = vector.load %arg4[%c0_5, %c0_6] : memref<1x32xf32, #tpu.memory_space<vmem>>, vector<1x32xf32>
    %5 = vector.broadcast %0 : f32 to vector<1x32xf32>
    %6 = arith.mulf %5, %4 : vector<1x32xf32>
    %c0_7 = arith.constant 0 : index
    %c0_8 = arith.constant 0 : index
    %7 = vector.load %arg5[%c0_7, %c0_8] : memref<1x32xf32, #tpu.memory_space<vmem>>, vector<1x32xf32>
    %8 = arith.addf %6, %7 : vector<1x32xf32>
    %9 = vector.broadcast %8 : vector<1x32xf32> to vector<8x32xf32>
    %10 = arith.addf %3, %9 : vector<8x32xf32>
    %cst_9 = arith.constant 0.000000e+00 : f32
    %11 = vector.broadcast %cst_9 : f32 to vector<8x32xf32>
    %12 = arith.maximumf %10, %11 : vector<8x32xf32>
    %c0_10 = arith.constant 0 : index
    %c0_11 = arith.constant 0 : index
    %13 = vector.load %arg6[%c0_10, %c0_11] : memref<32x32xf32, #tpu.memory_space<vmem>>, vector<32x32xf32>
    %cst_12 = arith.constant dense<0.000000e+00> : vector<8x32xf32>
    %14 = tpu.matmul %12, %13, %cst_12 {dimension_numbers = #tpu.dot_dimension_numbers<[1], [0], [0], [1], [0, 0, 1, 1], [], []>} : vector<8x32xf32>, vector<32x32xf32>, vector<8x32xf32> -> vector<8x32xf32>
    %c0_13 = arith.constant 0 : index
    %c0_14 = arith.constant 0 : index
    %15 = vector.load %arg7[%c0_13, %c0_14] : memref<1x32xf32, #tpu.memory_space<vmem>>, vector<1x32xf32>
    %16 = vector.broadcast %15 : vector<1x32xf32> to vector<8x32xf32>
    %17 = arith.addf %14, %16 : vector<8x32xf32>
    %cst_15 = arith.constant 0.000000e+00 : f32
    %18 = vector.broadcast %cst_15 : f32 to vector<8x32xf32>
    %19 = arith.maximumf %17, %18 : vector<8x32xf32>
    %c0_16 = arith.constant 0 : index
    %c0_17 = arith.constant 0 : index
    %20 = vector.load %arg8[%c0_16, %c0_17] : memref<32x4xf32, #tpu.memory_space<vmem>>, vector<32x4xf32>
    %cst_18 = arith.constant dense<0.000000e+00> : vector<8x4xf32>
    %21 = tpu.matmul %19, %20, %cst_18 {dimension_numbers = #tpu.dot_dimension_numbers<[1], [0], [0], [1], [0, 0, 1, 1], [], []>} : vector<8x32xf32>, vector<32x4xf32>, vector<8x4xf32> -> vector<8x4xf32>
    %c0_19 = arith.constant 0 : index
    %c0_20 = arith.constant 0 : index
    %22 = vector.load %arg9[%c0_19, %c0_20] : memref<1x4xf32, #tpu.memory_space<vmem>>, vector<1x4xf32>
    %23 = vector.broadcast %22 : vector<1x4xf32> to vector<8x4xf32>
    %24 = arith.addf %21, %23 : vector<8x4xf32>
    %c0_21 = arith.constant 0 : index
    %c0_22 = arith.constant 0 : index
    %25 = vector.load %arg10[%c0_21, %c0_22] : memref<1x4xf32, #tpu.memory_space<vmem>>, vector<1x4xf32>
    %c0_23 = arith.constant 0 : index
    %c0_24 = arith.constant 0 : index
    %26 = vector.load %arg11[%c0_23, %c0_24] : memref<1x4xf32, #tpu.memory_space<vmem>>, vector<1x4xf32>
    %27 = arith.subf %25, %26 : vector<1x4xf32>
    %cst_25 = arith.constant 5.000000e-01 : f32
    %28 = vector.broadcast %cst_25 : f32 to vector<1x4xf32>
    %29 = arith.mulf %28, %27 : vector<1x4xf32>
    %30 = math.tanh %24 : vector<8x4xf32>
    %31 = vector.broadcast %29 : vector<1x4xf32> to vector<8x4xf32>
    %32 = arith.mulf %31, %30 : vector<8x4xf32>
    %33 = arith.addf %25, %26 : vector<1x4xf32>
    %cst_26 = arith.constant 5.000000e-01 : f32
    %34 = vector.broadcast %cst_26 : f32 to vector<1x4xf32>
    %35 = arith.mulf %34, %33 : vector<1x4xf32>
    %36 = vector.broadcast %35 : vector<1x4xf32> to vector<8x4xf32>
    %37 = arith.addf %32, %36 : vector<8x4xf32>
    %c0_27 = arith.constant 0 : index
    %c0_28 = arith.constant 0 : index
    %38 = vector.load %arg12[%c0_27, %c0_28] : memref<8x4xf32, #tpu.memory_space<vmem>>, vector<8x4xf32>
    tpu.vector_store %arg12[%c0_27, %c0_28], %37 {strides = array<i32>} : memref<8x4xf32, #tpu.memory_space<vmem>>, vector<8x4xf32>,
    return
  }
  func.func @transform_0(%arg0: i32) -> (i32, i32) {
    %c0_i32 = arith.constant 0 : i32
    %c0_i32_0 = arith.constant 0 : i32
    %c0_i32_1 = arith.constant 0 : i32
    return %c0_i32, %c0_i32_0 : i32, i32
  }
  func.func @transform_1(%arg0: i32) -> (i32, i32) {
    %c0_i32 = arith.constant 0 : i32
    %c0_i32_0 = arith.constant 0 : i32
    return %arg0, %c0_i32 : i32, i32
  }
  func.func @transform_2(%arg0: i32) -> (i32, i32) {
    %c0_i32 = arith.constant 0 : i32
    %c0_i32_0 = arith.constant 0 : i32
    %c0_i32_1 = arith.constant 0 : i32
    return %c0_i32, %c0_i32_0 : i32, i32
  }
  func.func @transform_3(%arg0: i32) -> (i32, i32) {
    %c0_i32 = arith.constant 0 : i32
    %c0_i32_0 = arith.constant 0 : i32
    %c0_i32_1 = arith.constant 0 : i32
    return %c0_i32, %c0_i32_0 : i32, i32
  }
  func.func @transform_4(%arg0: i32) -> (i32, i32) {
    %c0_i32 = arith.constant 0 : i32
    %c0_i32_0 = arith.constant 0 : i32
    %c0_i32_1 = arith.constant 0 : i32
    return %c0_i32, %c0_i32_0 : i32, i32
  }
  func.func @transform_5(%arg0: i32) -> (i32, i32) {
    %c0_i32 = arith.constant 0 : i32
    %c0_i32_0 = arith.constant 0 : i32
    %c0_i32_1 = arith.constant 0 : i32
    return %c0_i32, %c0_i32_0 : i32, i32
  }
  func.func @transform_6(%arg0: i32) -> (i32, i32) {
    %c0_i32 = arith.constant 0 : i32
    %c0_i32_0 = arith.constant 0 : i32
    %c0_i32_1 = arith.constant 0 : i32
    return %c0_i32, %c0_i32_0 : i32, i32
  }
  func.func @transform_7(%arg0: i32) -> (i32, i32) {
    %c0_i32 = arith.constant 0 : i32
    %c0_i32_0 = arith.constant 0 : i32
    %c0_i32_1 = arith.constant 0 : i32
    return %c0_i32, %c0_i32_0 : i32, i32
  }
  func.func @transform_8(%arg0: i32) -> (i32, i32) {
    %c0_i32 = arith.constant 0 : i32
    %c0_i32_0 = arith.constant 0 : i32
    %c0_i32_1 = arith.constant 0 : i32
    return %c0_i32, %c0_i32_0 : i32, i32
  }
  func.func @transform_9(%arg0: i32) -> (i32, i32) {
    %c0_i32 = arith.constant 0 : i32
    %c0_i32_0 = arith.constant 0 : i32
    %c0_i32_1 = arith.constant 0 : i32
    return %c0_i32, %c0_i32_0 : i32, i32
  }
  func.func @transform_10(%arg0: i32) -> (i32, i32) {
    %c0_i32 = arith.constant 0 : i32
    %c0_i32_0 = arith.constant 0 : i32
    %c0_i32_1 = arith.constant 0 : i32
    return %c0_i32, %c0_i32_0 : i32, i32
  }
  func.func @transform_11(%arg0: i32) -> (i32, i32) {
    %c0_i32 = arith.constant 0 : i32
    %c0_i32_0 = arith.constant 0 : i32
    return %arg0, %c0_i32 : i32, i32
  }
}

</mosaic_0001>

<llo_original>
// kernel: finite_horizon_policy_forward.1
$region0: #{finite_horizon_policy_forward.1}
  #allocation0 [shape = 'u32[]', space=smem, size = 0x4, offset = 0x4, fixed_abs, tag = 'smem constant byte address 0x4 - core index']
  #allocation1 [shape = 'u32[144,128]{1,0:T(1,128)}', space=vmem, size = 0x12000, scoped, tag = 'internal scratch']
  #allocation2 [shape = 'f32[1,1]{1,0:T(1,128)S(6)}', space=smem, size = 0x200, scoped, tag = 'scoped memory for finite_horizon_policy_forward.1']
  %s0 = inlined_call_operand.<no memory space> [shape: f32[1,1], index: 0, kind: input, shape index: {}]
  %s1 = inlined_call_operand.vmem [shape: f32[16,12], index: 1, kind: input, shape index: {}]
  %s2 = inlined_call_operand.vmem [shape: f32[12,32], index: 2, kind: input, shape index: {}]
  %s3 = inlined_call_operand.vmem [shape: f32[1,32], index: 3, kind: input, shape index: {}]
  %s4 = inlined_call_operand.vmem [shape: f32[1,32], index: 4, kind: input, shape index: {}]
  %s5 = inlined_call_operand.vmem [shape: f32[32,32], index: 5, kind: input, shape index: {}]
  %s6 = inlined_call_operand.vmem [shape: f32[1,32], index: 6, kind: input, shape index: {}]
  %s7 = inlined_call_operand.vmem [shape: f32[32,4], index: 7, kind: input, shape index: {}]
  %s8 = inlined_call_operand.vmem [shape: f32[1,4], index: 8, kind: input, shape index: {}]
  %s9 = inlined_call_operand.vmem [shape: f32[1,4], index: 9, kind: input, shape index: {}]
  %s10 = inlined_call_operand.vmem [shape: f32[1,4], index: 10, kind: input, shape index: {}]
  %s11 = inlined_call_operand.vmem [shape: f32[16,4], index: 11, kind: output, shape index: {}]
  %s12 = sld [smem:[#allocation0]]
  $region77: #{finite_horizon_policy_forward.1} parent=0
    _
  %s14 = ssub.s32 1, %s12
  %s15 = scalar_select 0, %s14, %s12
  %16 = sst [smem:[#allocation2]] %s0
  loop: start=0, step=1, limit=4
  $region2: #{finite_horizon_policy_forward.1} parent=0 // loop_pre_header
    _
  $region3: #{finite_horizon_policy_forward.1} parent=0 // loop_header
    %s18 = sphi 0, %s22
    %p19 = scmp.ge.s32.totalorder %s18, 4
    %s26 = sphi 0, %s26
    %s28 = sphi 0, %s26
    %s29 = sphi 0, %s28
    %s43 = sphi 0, %s29
    %s49 = sphi 0, %s51
    %s52 = sphi 0, %s49
    %s53 = sphi 0, %s52
    %s69 = sphi 0, %s53
    %s73 = sphi 0, %s73
    %s75 = sphi 0, %s73
    %s76 = sphi 0, %s75
    %s90 = sphi 0, %s76
    %s94 = sphi 0, %s94
    %s96 = sphi 0, %s94
    %s97 = sphi 0, %s96
    %s111 = sphi 0, %s97
    %s115 = sphi 0, %s115
    %s117 = sphi 0, %s115
    %s118 = sphi 0, %s117
    %s132 = sphi 0, %s118
    %s136 = sphi 0, %s136
    %s138 = sphi 0, %s136
    %s139 = sphi 0, %s138
    %s153 = sphi 0, %s139
    %s157 = sphi 0, %s157
    %s159 = sphi 0, %s157
    %s160 = sphi 0, %s159
    %s174 = sphi 0, %s160
    %s178 = sphi 0, %s178
    %s180 = sphi 0, %s178
    %s181 = sphi 0, %s180
    %s195 = sphi 0, %s181
    %s199 = sphi 0, %s199
    %s201 = sphi 0, %s199
    %s202 = sphi 0, %s201
    %s216 = sphi 0, %s202
    %s220 = sphi 0, %s220
    %s222 = sphi 0, %s220
    %s223 = sphi 0, %s222
    %s237 = sphi 0, %s223
    %s241 = sphi 0, %s241
    %s243 = sphi 0, %s241
    %s244 = sphi 0, %s243
    %s258 = sphi 0, %s244
    %s264 = sphi 0, %s266
    %s267 = sphi 0, %s264
    %s268 = sphi 0, %s267
    %s284 = sphi 0, %s268
  $region4: #{finite_horizon_policy_forward.1} parent=0 // loop_header_branch
    %21 = sbr.rel (%p19) target = $region8
  $region5: #{finite_horizon_policy_forward.1} parent=0 // loop_body
    %s23 = ssub.s32 %s18, 1
    %s24 = ssub.s32 %s18, 2
    %s25 = sadd.s32 %s18, 1
    %s27 = sadd.s32 %s26, 1
    %p30 = scmp.eq.s32.totalorder %s18, 1
    %p31 = scmp.ne.s32.totalorder %s26, %s28
    %p32 = scmp.eq.s32.totalorder %s18, 0
    %p33 = por %p31, %p32
    %p34 = scmp.ne.s32.totalorder %s26, %s28
    %p35 = scmp.eq.s32.totalorder %s23, 1
    %p36 = por %p34, %p35
    %p37 = scmp.ne.s32.totalorder %s28, %s29
    %p38 = scmp.eq.s32.totalorder %s23, 0
    %p39 = por %p37, %p38
    %p40 = scmp.ne.s32.totalorder %s28, %s29
    %p41 = scmp.eq.s32.totalorder %s24, 1
    %p42 = por %p40, %p41
    %p44 = scmp.ne.s32.totalorder %s29, %s43
    %p45 = scmp.eq.s32.totalorder %s24, 0
    %p46 = por %p44, %p45
    %s47 = ssub.s32 %s18, %s25
    %p48 = scmp.eq.s32.totalorder %s47, 0
    %s50 = sadd.s32 %s49, 1
    %s51 = scalar_select %p48, %s49, %s50
    %p54 = pneg %p48
    %p55 = scmp.eq.s32.totalorder %s18, 1
    %p56 = por %p54, %p55
    %p57 = scmp.ne.s32.totalorder %s49, %s52
    %p58 = scmp.eq.s32.totalorder %s18, 0
    %p59 = por %p57, %p58
    %p60 = scmp.ne.s32.totalorder %s49, %s52
    %p61 = scmp.eq.s32.totalorder %s23, 1
    %p62 = por %p60, %p61
    %p63 = scmp.ne.s32.totalorder %s52, %s53
    %p64 = scmp.eq.s32.totalorder %s23, 0
    %p65 = por %p63, %p64
    %p66 = scmp.ne.s32.totalorder %s52, %s53
    %p67 = scmp.eq.s32.totalorder %s24, 1
    %p68 = por %p66, %p67
    %p70 = scmp.ne.s32.totalorder %s53, %s69
    %p71 = scmp.eq.s32.totalorder %s24, 0
    %p72 = por %p70, %p71
    %s74 = sadd.s32 %s73, 1
    %p77 = scmp.eq.s32.totalorder %s18, 1
    %p78 = scmp.ne.s32.totalorder %s73, %s75
    %p79 = scmp.eq.s32.totalorder %s18, 0
    %p80 = por %p78, %p79
    %p81 = scmp.ne.s32.totalorder %s73, %s75
    %p82 = scmp.eq.s32.totalorder %s23, 1
    %p83 = por %p81, %p82
    %p84 = scmp.ne.s32.totalorder %s75, %s76
    %p85 = scmp.eq.s32.totalorder %s23, 0
    %p86 = por %p84, %p85
    %p87 = scmp.ne.s32.totalorder %s75, %s76
    %p88 = scmp.eq.s32.totalorder %s24, 1
    %p89 = por %p87, %p88
    %p91 = scmp.ne.s32.totalorder %s76, %s90
    %p92 = scmp.eq.s32.totalorder %s24, 0
    %p93 = por %p91, %p92
    %s95 = sadd.s32 %s94, 1
    %p98 = scmp.eq.s32.totalorder %s18, 1
    %p99 = scmp.ne.s32.totalorder %s94, %s96
    %p100 = scmp.eq.s32.totalorder %s18, 0
    %p101 = por %p99, %p100
    %p102 = scmp.ne.s32.totalorder %s94, %s96
    %p103 = scmp.eq.s32.totalorder %s23, 1
    %p104 = por %p102, %p103
    %p105 = scmp.ne.s32.totalorder %s96, %s97
    %p106 = scmp.eq.s32.totalorder %s23, 0
    %p107 = por %p105, %p106
    %p108 = scmp.ne.s32.totalorder %s96, %s97
    %p109 = scmp.eq.s32.totalorder %s24, 1
    %p110 = por %p108, %p109
    %p112 = scmp.ne.s32.totalorder %s97, %s111
    %p113 = scmp.eq.s32.totalorder %s24, 0
    %p114 = por %p112, %p113
    %s116 = sadd.s32 %s115, 1
    %p119 = scmp.eq.s32.totalorder %s18, 1
    %p120 = scmp.ne.s32.totalorder %s115, %s117
    %p121 = scmp.eq.s32.totalorder %s18, 0
    %p122 = por %p120, %p121
    %p123 = scmp.ne.s32.totalorder %s115, %s117
    %p124 = scmp.eq.s32.totalorder %s23, 1
    %p125 = por %p123, %p124
    %p126 = scmp.ne.s32.totalorder %s117, %s118
    %p127 = scmp.eq.s32.totalorder %s23, 0
    %p128 = por %p126, %p127
    %p129 = scmp.ne.s32.totalorder %s117, %s118
    %p130 = scmp.eq.s32.totalorder %s24, 1
    %p131 = por %p129, %p130
    %p133 = scmp.ne.s32.totalorder %s118, %s132
    %p134 = scmp.eq.s32.totalorder %s24, 0
    %p135 = por %p133, %p134
    %s137 = sadd.s32 %s136, 1
    %p140 = scmp.eq.s32.totalorder %s18, 1
    %p141 = scmp.ne.s32.totalorder %s136, %s138
    %p142 = scmp.eq.s32.totalorder %s18, 0
    %p143 = por %p141, %p142
    %p144 = scmp.ne.s32.totalorder %s136, %s138
    %p145 = scmp.eq.s32.totalorder %s23, 1
    %p146 = por %p144, %p145
    %p147 = scmp.ne.s32.totalorder %s138, %s139
    %p148 = scmp.eq.s32.totalorder %s23, 0
    %p149 = por %p147, %p148
    %p150 = scmp.ne.s32.totalorder %s138, %s139
    %p151 = scmp.eq.s32.totalorder %s24, 1
    %p152 = por %p150, %p151
    %p154 = scmp.ne.s32.totalorder %s139, %s153
    %p155 = scmp.eq.s32.totalorder %s24, 0
    %p156 = por %p154, %p155
    %s158 = sadd.s32 %s157, 1
    %p161 = scmp.eq.s32.totalorder %s18, 1
    %p162 = scmp.ne.s32.totalorder %s157, %s159
    %p163 = scmp.eq.s32.totalorder %s18, 0
    %p164 = por %p162, %p163
    %p165 = scmp.ne.s32.totalorder %s157, %s159
    %p166 = scmp.eq.s32.totalorder %s23, 1
    %p167 = por %p165, %p166
    %p168 = scmp.ne.s32.totalorder %s159, %s160
    %p169 = scmp.eq.s32.totalorder %s23, 0
    %p170 = por %p168, %p169
    %p171 = scmp.ne.s32.totalorder %s159, %s160
    %p172 = scmp.eq.s32.totalorder %s24, 1
    %p173 = por %p171, %p172
    %p175 = scmp.ne.s32.totalorder %s160, %s174
    %p176 = scmp.eq.s32.totalorder %s24, 0
    %p177 = por %p175, %p176
    %s179 = sadd.s32 %s178, 1
    %p182 = scmp.eq.s32.totalorder %s18, 1
    %p183 = scmp.ne.s32.totalorder %s178, %s180
    %p184 = scmp.eq.s32.totalorder %s18, 0
    %p185 = por %p183, %p184
    %p186 = scmp.ne.s32.totalorder %s178, %s180
    %p187 = scmp.eq.s32.totalorder %s23, 1
    %p188 = por %p186, %p187
    %p189 = scmp.ne.s32.totalorder %s180, %s181
    %p190 = scmp.eq.s32.totalorder %s23, 0
    %p191 = por %p189, %p190
    %p192 = scmp.ne.s32.totalorder %s180, %s181
    %p193 = scmp.eq.s32.totalorder %s24, 1
    %p194 = por %p192, %p193
    %p196 = scmp.ne.s32.totalorder %s181, %s195
    %p197 = scmp.eq.s32.totalorder %s24, 0
    %p198 = por %p196, %p197
    %s200 = sadd.s32 %s199, 1
    %p203 = scmp.eq.s32.totalorder %s18, 1
    %p204 = scmp.ne.s32.totalorder %s199, %s201
    %p205 = scmp.eq.s32.totalorder %s18, 0
    %p206 = por %p204, %p205
    %p207 = scmp.ne.s32.totalorder %s199, %s201
    %p208 = scmp.eq.s32.totalorder %s23, 1
    %p209 = por %p207, %p208
    %p210 = scmp.ne.s32.totalorder %s201, %s202
    %p211 = scmp.eq.s32.totalorder %s23, 0
    %p212 = por %p210, %p211
    %p213 = scmp.ne.s32.totalorder %s201, %s202
    %p214 = scmp.eq.s32.totalorder %s24, 1
    %p215 = por %p213, %p214
    %p217 = scmp.ne.s32.totalorder %s202, %s216
    %p218 = scmp.eq.s32.totalorder %s24, 0
    %p219 = por %p217, %p218
    %s221 = sadd.s32 %s220, 1
    %p224 = scmp.eq.s32.totalorder %s18, 1
    %p225 = scmp.ne.s32.totalorder %s220, %s222
    %p226 = scmp.eq.s32.totalorder %s18, 0
    %p227 = por %p225, %p226
    %p228 = scmp.ne.s32.totalorder %s220, %s222
    %p229 = scmp.eq.s32.totalorder %s23, 1
    %p230 = por %p228, %p229
    %p231 = scmp.ne.s32.totalorder %s222, %s223
    %p232 = scmp.eq.s32.totalorder %s23, 0
    %p233 = por %p231, %p232
    %p234 = scmp.ne.s32.totalorder %s222, %s223
    %p235 = scmp.eq.s32.totalorder %s24, 1
    %p236 = por %p234, %p235
    %p238 = scmp.ne.s32.totalorder %s223, %s237
    %p239 = scmp.eq.s32.totalorder %s24, 0
    %p240 = por %p238, %p239
    %s242 = sadd.s32 %s241, 1
    %p245 = scmp.eq.s32.totalorder %s18, 1
    %p246 = scmp.ne.s32.totalorder %s241, %s243
    %p247 = scmp.eq.s32.totalorder %s18, 0
    %p248 = por %p246, %p247
    %p249 = scmp.ne.s32.totalorder %s241, %s243
    %p250 = scmp.eq.s32.totalorder %s23, 1
    %p251 = por %p249, %p250
    %p252 = scmp.ne.s32.totalorder %s243, %s244
    %p253 = scmp.eq.s32.totalorder %s23, 0
    %p254 = por %p252, %p253
    %p255 = scmp.ne.s32.totalorder %s243, %s244
    %p256 = scmp.eq.s32.totalorder %s24, 1
    %p257 = por %p255, %p256
    %p259 = scmp.ne.s32.totalorder %s244, %s258
    %p260 = scmp.eq.s32.totalorder %s24, 0
    %p261 = por %p259, %p260
    %s262 = ssub.s32 %s18, %s25
    %p263 = scmp.eq.s32.totalorder %s262, 0
    %s265 = sadd.s32 %s264, 1
    %s266 = scalar_select %p263, %s264, %s265
    %p269 = pneg %p263
    %p270 = scmp.eq.s32.totalorder %s18, 1
    %p271 = por %p269, %p270
    %p272 = scmp.ne.s32.totalorder %s264, %s267
    %p273 = scmp.eq.s32.totalorder %s18, 0
    %p274 = por %p272, %p273
    %p275 = scmp.ne.s32.totalorder %s264, %s267
    %p276 = scmp.eq.s32.totalorder %s23, 1
    %p277 = por %p275, %p276
    %p278 = scmp.ne.s32.totalorder %s267, %s268
    %p279 = scmp.eq.s32.totalorder %s23, 0
    %p280 = por %p278, %p279
    %p281 = scmp.ne.s32.totalorder %s267, %s268
    %p282 = scmp.eq.s32.totalorder %s24, 1
    %p283 = por %p281, %p282
    %p285 = scmp.ne.s32.totalorder %s268, %s284
    %p286 = scmp.eq.s32.totalorder %s24, 0
    %p287 = por %p285, %p286
    %p288 = scmp.le.s32.totalorder 1, %s18
    %p289 = scmp.lt.s32.totalorder %s18, 3
    %p290 = pnand %p288, %p289
    %p291 = pneg %p290
    // Predicated region
    $region9: #{finite_horizon_policy_forward.1} parent=5 // pred_check
      _
    $region10: #{finite_horizon_policy_forward.1} parent=5 // pred_check_branch
      %293 = sbr.rel (%p290) target = $region12
    $region11: #{finite_horizon_policy_forward.1} parent=5 // pred_region
      %s294 = ssub.s32 %s18, 1
      // Predicated region
      $region13: #{finite_horizon_policy_forward.1} parent=11 // pred_check
        %p295 = pneg %p39
      $region14: #{finite_horizon_policy_forward.1} parent=11 // pred_check_branch
        %297 = sbr.rel (%p295) target = $region16
      $region15: #{finite_horizon_policy_forward.1} parent=11 // pred_region
        _
      $region16: #{finite_horizon_policy_forward.1} parent=11 // pred_fallthru
        _
      // Predicated region
      $region17: #{finite_horizon_policy_forward.1} parent=11 // pred_check
        %p298 = pneg %p86
      $region18: #{finite_horizon_policy_forward.1} parent=11 // pred_check_branch
        %300 = sbr.rel (%p298) target = $region20
      $region19: #{finite_horizon_policy_forward.1} parent=11 // pred_region
        _
      $region20: #{finite_horizon_policy_forward.1} parent=11 // pred_fallthru
        _
      // Predicated region
      $region21: #{finite_horizon_policy_forward.1} parent=11 // pred_check
        %p301 = pneg %p107
      $region22: #{finite_horizon_policy_forward.1} parent=11 // pred_check_branch
        %303 = sbr.rel (%p301) target = $region24
      $region23: #{finite_horizon_policy_forward.1} parent=11 // pred_region
        _
      $region24: #{finite_horizon_policy_forward.1} parent=11 // pred_fallthru
        _
      // Predicated region
      $region25: #{finite_horizon_policy_forward.1} parent=11 // pred_check
        %p304 = pneg %p128
      $region26: #{finite_horizon_policy_forward.1} parent=11 // pred_check_branch
        %306 = sbr.rel (%p304) target = $region28
      $region27: #{finite_horizon_policy_forward.1} parent=11 // pred_region
        _
      $region28: #{finite_horizon_policy_forward.1} parent=11 // pred_fallthru
        _
      // Predicated region
      $region29: #{finite_horizon_policy_forward.1} parent=11 // pred_check
        %p307 = pneg %p149
      $region30: #{finite_horizon_policy_forward.1} parent=11 // pred_check_branch
        %309 = sbr.rel (%p307) target = $region32
      $region31: #{finite_horizon_policy_forward.1} parent=11 // pred_region
        _
      $region32: #{finite_horizon_policy_forward.1} parent=11 // pred_fallthru
        _
      // Predicated region
      $region33: #{finite_horizon_policy_forward.1} parent=11 // pred_check
        %p310 = pneg %p170
      $region34: #{finite_horizon_policy_forward.1} parent=11 // pred_check_branch
        %312 = sbr.rel (%p310) target = $region36
      $region35: #{finite_horizon_policy_forward.1} parent=11 // pred_region
        _
      $region36: #{finite_horizon_policy_forward.1} parent=11 // pred_fallthru
        _
      // Predicated region
      $region37: #{finite_horizon_policy_forward.1} parent=11 // pred_check
        %p313 = pneg %p191
      $region38: #{finite_horizon_policy_forward.1} parent=11 // pred_check_branch
        %315 = sbr.rel (%p313) target = $region40
      $region39: #{finite_horizon_policy_forward.1} parent=11 // pred_region
        _
      $region40: #{finite_horizon_policy_forward.1} parent=11 // pred_fallthru
        _
      // Predicated region
      $region41: #{finite_horizon_policy_forward.1} parent=11 // pred_check
        %p316 = pneg %p212
      $region42: #{finite_horizon_policy_forward.1} parent=11 // pred_check_branch
        %318 = sbr.rel (%p316) target = $region44
      $region43: #{finite_horizon_policy_forward.1} parent=11 // pred_region
        _
      $region44: #{finite_horizon_policy_forward.1} parent=11 // pred_fallthru
        _
      // Predicated region
      $region45: #{finite_horizon_policy_forward.1} parent=11 // pred_check
        %p319 = pneg %p233
      $region46: #{finite_horizon_policy_forward.1} parent=11 // pred_check_branch
        %321 = sbr.rel (%p319) target = $region48
      $region47: #{finite_horizon_policy_forward.1} parent=11 // pred_region
        _
      $region48: #{finite_horizon_policy_forward.1} parent=11 // pred_fallthru
        _
      // Predicated region
      $region49: #{finite_horizon_policy_forward.1} parent=11 // pred_check
        %p322 = pneg %p254
      $region50: #{finite_horizon_policy_forward.1} parent=11 // pred_check_branch
        %324 = sbr.rel (%p322) target = $region52
      $region51: #{finite_horizon_policy_forward.1} parent=11 // pred_region
        _
      $region52: #{finite_horizon_policy_forward.1} parent=11 // pred_fallthru
        _
    $region12: #{finite_horizon_policy_forward.1} parent=5 // pred_fallthru
      _
    %p325 = scmp.lt.s32.totalorder %s18, 2
    // Predicated region
    $region53: #{finite_horizon_policy_forward.1} parent=5 // pred_check
      %p326 = pneg %p325
    $region54: #{finite_horizon_policy_forward.1} parent=5 // pred_check_branch
      %328 = sbr.rel (%p326) target = $region56
    $region55: #{finite_horizon_policy_forward.1} parent=5 // pred_region
      // Predicated region
      $region57: #{finite_horizon_policy_forward.1} parent=55 // pred_check
        %p329 = pneg %p59
      $region58: #{finite_horizon_policy_forward.1} parent=55 // pred_check_branch
        %331 = sbr.rel (%p329) target = $region60
      $region59: #{finite_horizon_policy_forward.1} parent=55 // pred_region
        %p332 = scmp.lt.s32.totalorder %s18, 1
        %s333 = scalar_select %p332, %s18, 1
        %s334 = smul.addr %s333, 8
        %s335 = scalar_lea.vmem %s1, %s334
      $region60: #{finite_horizon_policy_forward.1} parent=55 // pred_fallthru
        _
    $region56: #{finite_horizon_policy_forward.1} parent=5 // pred_fallthru
      _
    %p336 = scmp.le.s32.totalorder 1, %s18
    %p337 = scmp.lt.s32.totalorder %s18, 3
    %p338 = pnand %p336, %p337
    %p339 = pneg %p338
    // Predicated region
    $region61: #{finite_horizon_policy_forward.1} parent=5 // pred_check
      _
    $region62: #{finite_horizon_policy_forward.1} parent=5 // pred_check_branch
      %341 = sbr.rel (%p338) target = $region64
    $region63: #{finite_horizon_policy_forward.1} parent=5 // pred_region
      %s342 = ssub.s32 %s18, 1
      %p343 = pneg %p39
      %p344 = pneg %p36
      %p345 = scmp.lt.s32.totalorder %s23, 1
      %s346 = scalar_select %p345, %s23, 1
      %s347 = smul.addr %s346, 8
      %s348 = scalar_lea.vmem %s1, %s347
      %p349 = pneg %p65
      %p350 = pneg %p62
      %p351 = pneg %p86
      %p352 = pneg %p83
      %p353 = pneg %p107
      %p354 = pneg %p104
      %p355 = pneg %p128
      %p356 = pneg %p125
      %p357 = pneg %p149
      %p358 = pneg %p146
      %p359 = pneg %p170
      %p360 = pneg %p167
      %p361 = pneg %p191
      %p362 = pneg %p188
      %p363 = pneg %p212
      %p364 = pneg %p209
      %p365 = pneg %p233
      %p366 = pneg %p230
      %p367 = pneg %p254
      %p368 = pneg %p251
      %p369 = pneg %p280
      %p370 = pneg %p277
      %p371 = scmp.lt.s32.totalorder %s23, 1
      %s372 = scalar_select %p371, %s23, 1
      %s373 = smul.addr %s372, 8
      %s374 = scalar_lea.vmem %s11, %s373
      %p375 = scmp.lt.s32.totalorder %s23, 1
      %s376 = scalar_select %p375, %s23, 1
      %s377 = smul.addr %s376, 8
      %s378 = scalar_lea.vmem %s1, %s377
      %p379 = scmp.lt.s32.totalorder %s23, 1
      %s380 = scalar_select %p379, %s23, 1
      %s381 = smul.addr %s380, 8
      %s382 = scalar_lea.vmem %s11, %s381
      %s383 = sld [smem:[#allocation2]]
      %v384 = vld [vmem:[%s378] sm:$0xff]
      %v385 = vld [vmem:[%s2] sm:$0xff]
      %v386 = vld [vmem:[%s2 + $0x8] sm:$0xf]
      %v387 = vld [vmem:[%s3] sm:$0x1]
      %v388 = vstv %s383
      %v389 = vmul.f32 %v388, %v387
      %v390 = vld [vmem:[%s4] sm:$0x1]
      %v391 = vadd.f32 %v389, %v390
      %v393 = vlaneseq
      %v394 = vshrl.u32 %v393, 7
      %v395 = vsub.s32 0, %v394
      %v396 = vrot.slane %v391, %v395
      %vm398 = vcmask 97280
      %v400 = vsel %vm398, %v384, 0
      %vm402 = vcmask 1043456
      %v404 = vsel %vm402, %v386, 0
      %406 = vmatprep.subr.mxu0 0.0
      %407 = vmatpush1.msra.mxu0 %v385
      %408 = vmatprep.subr.mxu0 0.0
      %409 = vmatpush1.msra.mxu0 %v404
      %410 = vmatprep.subr.mxu0 0.0
      %411 = vmatpush1.msra.mxu0 0.0
      %412 = vmatprep.subr.mxu0 0.0
      %413 = vmatpush1.msra.mxu0 0.0
      %414 = vmatprep.subr.mxu0 0.0
      %415 = vmatpush1.msra.mxu0 0.0
      %416 = vmatprep.subr.mxu0 0.0
      %417 = vmatpush1.msra.mxu0 0.0
      %418 = vmatprep.subr.mxu0 0.0
      %419 = vmatpush1.msra.mxu0 0.0
      %420 = vmatprep.subr.mxu0 0.0
      %421 = vmatpush1.msra.mxu0 0.0
      %422 = vmatprep.subr.mxu0 0.0
      %423 = vmatpush1.msra.mxu0 0.0
      %424 = vmatprep.subr.mxu0 0.0
      %425 = vmatpush1.msra.mxu0 0.0
      %426 = vmatprep.subr.mxu0 0.0
      %427 = vmatpush1.msra.mxu0 0.0
      %428 = vmatprep.subr.mxu0 0.0
      %429 = vmatpush1.msra.mxu0 0.0
      %430 = vmatprep.subr.mxu0 0.0
      %431 = vmatpush1.msra.mxu0 0.0
      %432 = vmatprep.subr.mxu0 0.0
      %433 = vmatpush1.msra.mxu0 0.0
      %434 = vmatprep.subr.mxu0 0.0
      %435 = vmatpush1.msra.mxu0 0.0
      %436 = vmatprep.subr.mxu0 0.0
      %437 = vmatpush1.msra.mxu0 0.0
      %438 = vmatprep.subr.mxu0 0.0
      %439 = vmatpush1.msra.mxu0 0.0
      %440 = vmatprep.subr.mxu0 0.0
      %441 = vmatpush1.msra.mxu0 0.0
      %442 = vmatprep.subr.mxu0 0.0
      %443 = vmatpush1.msra.mxu0 0.0
      %444 = vmatprep.subr.mxu0 0.0
      %445 = vmatpush1.msra.mxu0 0.0
      %446 = vmatprep.subr.mxu0 0.0
      %447 = vmatpush1.msra.mxu0 0.0
      %448 = vmatprep.subr.mxu0 0.0
      %449 = vmatpush1.msra.mxu0 0.0
      %450 = vmatprep.subr.mxu0 0.0
      %451 = vmatpush1.msra.mxu0 0.0
      %452 = vmatprep.subr.mxu0 0.0
      %453 = vmatpush1.msra.mxu0 0.0
      %454 = vmatprep.subr.mxu0 0.0
      %455 = vmatpush1.msra.mxu0 0.0
      %456 = vmatprep.subr.mxu0 0.0
      %457 = vmatpush1.msra.mxu0 0.0
      %458 = vmatprep.subr.mxu0 0.0
      %459 = vmatpush1.msra.mxu0 0.0
      %460 = vmatprep.subr.mxu0 0.0
      %461 = vmatpush1.msra.mxu0 0.0
      %462 = vmatprep.subr.mxu0 0.0
      %463 = vmatpush1.msra.mxu0 0.0
      %464 = vmatprep.subr.mxu0 0.0
      %465 = vmatpush1.msra.mxu0 0.0
      %466 = vmatprep.subr.mxu0 0.0
      %467 = vmatpush1.msra.mxu0 0.0
      %468 = vmatprep.subr.mxu0 0.0
      %469 = vmatpush1.msra.mxu0 0.0
      %470 = vmatprep.mubr.f32.mxu0 0.0
      %471 = vmatmul.mubr.f32.gmra.mrb[0].mxu0 %v400
      %v472 = vpop.f32.mrb[0].mxu0
      %v473 = vadd.f32 %v396, %v472
      %v474 = vpop.f32.mrb[0].mxu0
      %475 = vdwg.mxu0
      %v476 = vmax.f32 %v473, 0.0
      %v477 = vld [vmem:[%s5] sm:$0xff]
      %v478 = vld [vmem:[%s5 + $0x8] sm:$0xff]
      %v479 = vld [vmem:[%s5 + $0x10] sm:$0xff]
      %v480 = vld [vmem:[%s5 + $0x18] sm:$0xff]
      %v481 = vld [vmem:[%s6] sm:$0x1]
      %v483 = vlaneseq
      %v484 = vshrl.u32 %v483, 7
      %v485 = vsub.s32 0, %v484
      %v486 = vrot.slane %v481, %v485
      %vm488 = vcmask 261120
      %v490 = vsel %vm488, %v476, 0
      %492 = vmatprep.subr.mxu0 0.0
      %493 = vmatpush1.msra.mxu0 %v477
      %494 = vmatprep.subr.mxu0 0.0
      %495 = vmatpush1.msra.mxu0 %v478
      %496 = vmatprep.subr.mxu0 0.0
      %497 = vmatpush1.msra.mxu0 %v479
      %498 = vmatprep.subr.mxu0 0.0
      %499 = vmatpush1.msra.mxu0 %v480
      %500 = vmatprep.subr.mxu0 0.0
      %501 = vmatpush1.msra.mxu0 0.0
      %502 = vmatprep.subr.mxu0 0.0
      %503 = vmatpush1.msra.mxu0 0.0
      %504 = vmatprep.subr.mxu0 0.0
      %505 = vmatpush1.msra.mxu0 0.0
      %506 = vmatprep.subr.mxu0 0.0
      %507 = vmatpush1.msra.mxu0 0.0
      %508 = vmatprep.subr.mxu0 0.0
      %509 = vmatpush1.msra.mxu0 0.0
      %510 = vmatprep.subr.mxu0 0.0
      %511 = vmatpush1.msra.mxu0 0.0
      %512 = vmatprep.subr.mxu0 0.0
      %513 = vmatpush1.msra.mxu0 0.0
      %514 = vmatprep.subr.mxu0 0.0
      %515 = vmatpush1.msra.mxu0 0.0
      %516 = vmatprep.subr.mxu0 0.0
      %517 = vmatpush1.msra.mxu0 0.0
      %518 = vmatprep.subr.mxu0 0.0
      %519 = vmatpush1.msra.mxu0 0.0
      %520 = vmatprep.subr.mxu0 0.0
      %521 = vmatpush1.msra.mxu0 0.0
      %522 = vmatprep.subr.mxu0 0.0
      %523 = vmatpush1.msra.mxu0 0.0
      %524 = vmatprep.subr.mxu0 0.0
      %525 = vmatpush1.msra.mxu0 0.0
      %526 = vmatprep.subr.mxu0 0.0
      %527 = vmatpush1.msra.mxu0 0.0
      %528 = vmatprep.subr.mxu0 0.0
      %529 = vmatpush1.msra.mxu0 0.0
      %530 = vmatprep.subr.mxu0 0.0
      %531 = vmatpush1.msra.mxu0 0.0
      %532 = vmatprep.subr.mxu0 0.0
      %533 = vmatpush1.msra.mxu0 0.0
      %534 = vmatprep.subr.mxu0 0.0
      %535 = vmatpush1.msra.mxu0 0.0
      %536 = vmatprep.subr.mxu0 0.0
      %537 = vmatpush1.msra.mxu0 0.0
      %538 = vmatprep.subr.mxu0 0.0
      %539 = vmatpush1.msra.mxu0 0.0
      %540 = vmatprep.subr.mxu0 0.0
      %541 = vmatpush1.msra.mxu0 0.0
      %542 = vmatprep.subr.mxu0 0.0
      %543 = vmatpush1.msra.mxu0 0.0
      %544 = vmatprep.subr.mxu0 0.0
      %545 = vmatpush1.msra.mxu0 0.0
      %546 = vmatprep.subr.mxu0 0.0
      %547 = vmatpush1.msra.mxu0 0.0
      %548 = vmatprep.subr.mxu0 0.0
      %549 = vmatpush1.msra.mxu0 0.0
      %550 = vmatprep.subr.mxu0 0.0
      %551 = vmatpush1.msra.mxu0 0.0
      %552 = vmatprep.subr.mxu0 0.0
      %553 = vmatpush1.msra.mxu0 0.0
      %554 = vmatprep.subr.mxu0 0.0
      %555 = vmatpush1.msra.mxu0 0.0
      %556 = vmatprep.mubr.f32.mxu0 0.0
      %557 = vmatmul.mubr.f32.gmra.mrb[0].mxu0 %v490
      %v558 = vpop.f32.mrb[0].mxu0
      %v559 = vadd.f32 %v486, %v558
      %v560 = vpop.f32.mrb[0].mxu0
      %561 = vdwg.mxu0
      %v562 = vmax.f32 %v559, 0.0
      %v563 = vld [vmem:[%s7] sm:$0xff]
      %v564 = vld [vmem:[%s7 + $0x8] sm:$0xff]
      %v565 = vld [vmem:[%s7 + $0x10] sm:$0xff]
      %v566 = vld [vmem:[%s7 + $0x18] sm:$0xff]
      %v567 = vld [vmem:[%s8] sm:$0x1]
      %v569 = vlaneseq
      %v570 = vshrl.u32 %v569, 7
      %v571 = vsub.s32 0, %v570
      %v572 = vrot.slane %v567, %v571
      %v575 = vsel %vm488, %v562, 0
      %577 = vmatprep.subr.mxu0 0.0
      %578 = vmatpush1.msra.mxu0 %v563
      %579 = vmatprep.subr.mxu0 0.0
      %580 = vmatpush1.msra.mxu0 %v564
      %581 = vmatprep.subr.mxu0 0.0
      %582 = vmatpush1.msra.mxu0 %v565
      %583 = vmatprep.subr.mxu0 0.0
      %584 = vmatpush1.msra.mxu0 %v566
      %585 = vmatprep.subr.mxu0 0.0
      %586 = vmatpush1.msra.mxu0 0.0
      %587 = vmatprep.subr.mxu0 0.0
      %588 = vmatpush1.msra.mxu0 0.0
      %589 = vmatprep.subr.mxu0 0.0
      %590 = vmatpush1.msra.mxu0 0.0
      %591 = vmatprep.subr.mxu0 0.0
      %592 = vmatpush1.msra.mxu0 0.0
      %593 = vmatprep.subr.mxu0 0.0
      %594 = vmatpush1.msra.mxu0 0.0
      %595 = vmatprep.subr.mxu0 0.0
      %596 = vmatpush1.msra.mxu0 0.0
      %597 = vmatprep.subr.mxu0 0.0
      %598 = vmatpush1.msra.mxu0 0.0
      %599 = vmatprep.subr.mxu0 0.0
      %600 = vmatpush1.msra.mxu0 0.0
      %601 = vmatprep.subr.mxu0 0.0
      %602 = vmatpush1.msra.mxu0 0.0
      %603 = vmatprep.subr.mxu0 0.0
      %604 = vmatpush1.msra.mxu0 0.0
      %605 = vmatprep.subr.mxu0 0.0
      %606 = vmatpush1.msra.mxu0 0.0
      %607 = vmatprep.subr.mxu0 0.0
      %608 = vmatpush1.msra.mxu0 0.0
      %609 = vmatprep.subr.mxu0 0.0
      %610 = vmatpush1.msra.mxu0 0.0
      %611 = vmatprep.subr.mxu0 0.0
      %612 = vmatpush1.msra.mxu0 0.0
      %613 = vmatprep.subr.mxu0 0.0
      %614 = vmatpush1.msra.mxu0 0.0
      %615 = vmatprep.subr.mxu0 0.0
      %616 = vmatpush1.msra.mxu0 0.0
      %617 = vmatprep.subr.mxu0 0.0
      %618 = vmatpush1.msra.mxu0 0.0
      %619 = vmatprep.subr.mxu0 0.0
      %620 = vmatpush1.msra.mxu0 0.0
      %621 = vmatprep.subr.mxu0 0.0
      %622 = vmatpush1.msra.mxu0 0.0
      %623 = vmatprep.subr.mxu0 0.0
      %624 = vmatpush1.msra.mxu0 0.0
      %625 = vmatprep.subr.mxu0 0.0
      %626 = vmatpush1.msra.mxu0 0.0
      %627 = vmatprep.subr.mxu0 0.0
      %628 = vmatpush1.msra.mxu0 0.0
      %629 = vmatprep.subr.mxu0 0.0
      %630 = vmatpush1.msra.mxu0 0.0
      %631 = vmatprep.subr.mxu0 0.0
      %632 = vmatpush1.msra.mxu0 0.0
      %633 = vmatprep.subr.mxu0 0.0
      %634 = vmatpush1.msra.mxu0 0.0
      %635 = vmatprep.subr.mxu0 0.0
      %636 = vmatpush1.msra.mxu0 0.0
      %637 = vmatprep.subr.mxu0 0.0
      %638 = vmatpush1.msra.mxu0 0.0
      %639 = vmatprep.subr.mxu0 0.0
      %640 = vmatpush1.msra.mxu0 0.0
      %641 = vmatprep.mubr.f32.mxu0 0.0
      %642 = vmatmul.mubr.f32.gmra.mrb[0].mxu0 %v575
      %v643 = vpop.f32.mrb[0].mxu0
      %v644 = vadd.f32 %v572, %v643
      %v645 = vpop.f32.mrb[0].mxu0
      %646 = vdwg.mxu0
      %v647 = vld [vmem:[%s9] sm:$0x1]
      %v648 = vld [vmem:[%s10] sm:$0x1]
      %v649 = vsub.f32 %v647, %v648
      %v650 = vmul.f32 %v649, 0.5
      %v651 = vtanh.pop %v644
      %v653 = vlaneseq
      %v654 = vshrl.u32 %v653, 7
      %v655 = vsub.s32 0, %v654
      %v656 = vrot.slane %v650, %v655
      %v658 = vmul.f32 %v656, %v651
      %v659 = vadd.f32 %v647, %v648
      %v660 = vmul.f32 %v659, 0.5
      %v662 = vlaneseq
      %v663 = vshrl.u32 %v662, 7
      %v664 = vsub.s32 0, %v663
      %v665 = vrot.slane %v660, %v664
      %v667 = vadd.f32 %v658, %v665
      %vm668 = vcmask 31744
      %669 = vst.msk [vmem:[%s382] sm:$0xff] %vm668, %v667
      %p670 = scmp.lt.s32.totalorder %s23, 1
      %s671 = scalar_select %p670, %s23, 1
      %s672 = smul.addr %s671, 8
      %s673 = scalar_lea.vmem %s11, %s672
      // Predicated region
      $region65: #{finite_horizon_policy_forward.1} parent=63 // pred_check
        %p674 = pneg %p277
      $region66: #{finite_horizon_policy_forward.1} parent=63 // pred_check_branch
        %676 = sbr.rel (%p674) target = $region68
      $region67: #{finite_horizon_policy_forward.1} parent=63 // pred_region
        _
      $region68: #{finite_horizon_policy_forward.1} parent=63 // pred_fallthru
        _
    $region64: #{finite_horizon_policy_forward.1} parent=5 // pred_fallthru
      _
    %p677 = scmp.le.s32.totalorder 2, %s18
    // Predicated region
    $region69: #{finite_horizon_policy_forward.1} parent=5 // pred_check
      %p678 = pneg %p677
    $region70: #{finite_horizon_policy_forward.1} parent=5 // pred_check_branch
      %680 = sbr.rel (%p678) target = $region72
    $region71: #{finite_horizon_policy_forward.1} parent=5 // pred_region
      %s681 = ssub.s32 %s18, 2
      // Predicated region
      $region73: #{finite_horizon_policy_forward.1} parent=71 // pred_check
        %p682 = pneg %p283
      $region74: #{finite_horizon_policy_forward.1} parent=71 // pred_check_branch
        %684 = sbr.rel (%p682) target = $region76
      $region75: #{finite_horizon_policy_forward.1} parent=71 // pred_region
        %p685 = scmp.lt.s32.totalorder %s24, 1
        %s686 = scalar_select %p685, %s24, 1
        %s687 = smul.addr %s686, 8
        %s688 = scalar_lea.vmem %s11, %s687
      $region76: #{finite_horizon_policy_forward.1} parent=71 // pred_fallthru
        _
    $region72: #{finite_horizon_policy_forward.1} parent=5 // pred_fallthru
      _
  $region6: #{finite_horizon_policy_forward.1} parent=0 // loop_footer
    %s22 = sadd.s32 1, %s18
  $region7: #{finite_horizon_policy_forward.1} parent=0 // loop_footer_branch
    %17 = sbr.rel target = $region3
  $region8: #{finite_horizon_policy_forward.1} parent=0 // loop_exit
    _

</llo_original>
